<compile_context>
chip_gen: v5e
topology: v5e:2x2
jax: 0.10.0
libtpu: 0.0.40
codegen_flags: <defaults>
</compile_context>

<pallas_src>
import functools

import jax
import jax.numpy as jnp
from jax import lax
from jax.experimental import pallas as pl
from jax.experimental.pallas import tpu as pltpu


def _round_up(x, m):
    return ((x + m - 1) // m) * m


def _vmem_capacity_bytes():
    """Best-effort VMEM capacity query; falls back to the smallest (v7x) size."""
    try:
        info = pltpu.get_tpu_info()
        cap = getattr(info, "vmem_capacity_bytes", None)
        if cap:
            return int(cap)
    except Exception:
        pass
    return 64 * 1024 * 1024


def _ce_label_smooth_kernel(x_ref, t_ref, o_ref, *,
                            epsilon, num_classes, n_total, block_rows):
    # x_ref: (TN, C) logits tile in VMEM; t_ref: (TN, 1) int32 labels tile.
    # o_ref: (1, 8, 128) f32 block holding this tile's partial sum (broadcast).
    i = pl.program_id(0)

    x = x_ref[...].astype(jnp.float32)                       # (TN, C)
    tn, c = x.shape

    # Numerically stable log-softmax pieces; log_probs never materialized.
    m = jnp.max(x, axis=1, keepdims=True)                    # (TN, 1)
    shifted = x - m                                          # (TN, C)
    lse = jnp.log(jnp.sum(jnp.exp(shifted), axis=1, keepdims=True))  # (TN, 1)

    # Single fused weighted reduce over classes:
    #   loss_i = lse_i - sum_j w_ij * shifted_ij ,   sum_j w_ij == 1.
    uni = epsilon / num_classes
    cls_ids = lax.broadcasted_iota(jnp.int32, (tn, c), 1)
    w = jnp.where(cls_ids == t_ref[...], 1.0 - epsilon + uni, uni)
    per_row = lse - jnp.sum(w * shifted, axis=1, keepdims=True)      # (TN, 1)

    # Mask rows of the ragged last tile (select does not propagate NaN/Inf
    # from whatever bits sit in the OOB padding).
    row_ids = i * block_rows + lax.broadcasted_iota(jnp.int32, (tn, 1), 0)
    valid = row_ids < n_total
    partial = jnp.sum(jnp.where(valid, per_row, 0.0))

    # Lane-dense, (8,128)-aligned per-tile output; wrapper reads [i, 0, 0].
    o_ref[...] = jnp.full(o_ref.shape, partial, dtype=o_ref.dtype)


def cross_entropy_label_smooth(inputs, targets, *, num_classes, epsilon,
                               block_rows=None):
    """JAX/Pallas equivalent of CrossEntropyLabelSmooth.forward.

    inputs:  (N, num_classes) float logits (f32 or bf16)
    targets: (N,) integer class indices in [0, num_classes)
    returns: scalar float32 loss
    """
    n, c = inputs.shape
    assert c == num_classes
    targets_2d = targets.astype(jnp.int32).reshape(n, 1)

    # Sublane multiple depends on input packing (f32: 8, bf16: 16, 8-bit: 32).
    itemsize = jnp.dtype(inputs.dtype).itemsize
    row_mult = {4: 8, 2: 16, 1: 32}.get(itemsize, 8)

    # VMEM budget: ~3/4 of physical (capped at 96 MiB); one f32 logits tile
    # gets ~1/6 of that to leave room for the double buffer and the ~3
    # full-tile f32 temporaries (shifted, exp, weighted) the body creates.
    vmem_cap = _vmem_capacity_bytes()
    vmem_limit = int(min((vmem_cap * 3) // 4, 96 * 1024 * 1024))
    tile_budget = vmem_limit // 6
    cap_rows = max(row_mult, (tile_budget // (c * 4)) // row_mult * row_mult)

    tn = _round_up(n if block_rows is None else block_rows, row_mult)
    tn = max(row_mult, min(tn, cap_rows))
    num_tiles = pl.cdiv(n, tn)

    kernel = functools.partial(
        _ce_label_smooth_kernel,
        epsilon=float(epsilon),
        num_classes=int(num_classes),
        n_total=int(n),
        block_rows=int(tn),
    )

    out = pl.pallas_call(
        kernel,
        out_shape=jax.ShapeDtypeStruct((num_tiles, 8, 128), jnp.float32),
        grid_spec=pltpu.PrefetchScalarGridSpec(
            num_scalar_prefetch=0,
            grid=(num_tiles,),
            in_specs=[
                pl.BlockSpec((tn, c), lambda i: (i, 0)),     # logits tile
                pl.BlockSpec((tn, 1), lambda i: (i, 0)),     # labels tile
            ],
            out_specs=pl.BlockSpec((1, 8, 128), lambda i: (i, 0, 0)),
        ),
        compiler_params=pltpu.CompilerParams(
            dimension_semantics=("parallel",),   # tiles are independent
            vmem_limit_bytes=vmem_limit,
        ),
    )(inputs, targets_2d)

    # Final reduce + single divide by the true N (matches `.mean(0).sum()`).
    return jnp.sum(out[:, 0, 0]) / jnp.float32(n)


if __name__ == "__main__":
    key = jax.random.PRNGKey(0)

    def reference(logits, labels, num_classes, epsilon):
        log_probs = jax.nn.log_softmax(logits.astype(jnp.float32), axis=1)
        onehot = jax.nn.one_hot(labels, num_classes, dtype=jnp.float32)
        smoothed = (1.0 - epsilon) * onehot + epsilon / num_classes
        return jnp.sum(jnp.mean(-smoothed * log_probs, axis=0))

    epsilon = 0.1
    k1, k2, k3, k4, k5, k6 = jax.random.split(key, 6)

    # Case 1: small shape matching the module spec (single tile, C < 128).
    batch, num_classes = 8, 16
    logits = jax.random.normal(k1, (batch, num_classes), dtype=jnp.float32)
    labels = jax.random.randint(k2, (batch,), 0, num_classes, dtype=jnp.int32)
    loss = cross_entropy_label_smooth(
        logits, labels, num_classes=num_classes, epsilon=epsilon)
    jax.block_until_ready(loss)
    ref = reference(logits, labels, num_classes, epsilon)
    assert jnp.allclose(loss, ref, atol=3e-5, rtol=3e-5), (loss, ref)

    # Case 2: multi-tile parallel grid with a ragged last tile (exercises the
    # OOB masking and the per-tile partial outputs; C=256 is lane-dense).
    batch2, classes2 = 300, 256
    logits2 = jax.random.normal(k3, (batch2, classes2), dtype=jnp.float32)
    labels2 = jax.random.randint(k4, (batch2,), 0, classes2, dtype=jnp.int32)
    loss2 = cross_entropy_label_smooth(
        logits2, labels2, num_classes=classes2, epsilon=epsilon, block_rows=128)
    jax.block_until_ready(loss2)
    ref2 = reference(logits2, labels2, classes2, epsilon)
    assert jnp.allclose(loss2, ref2, atol=3e-5, rtol=3e-5), (loss2, ref2)

    # Case 3: bf16 logits (row tile rounded to a multiple of 16; f32 cast
    # happens inside the kernel).
    batch3, classes3 = 64, 128
    logits3 = jax.random.normal(k5, (batch3, classes3)).astype(jnp.bfloat16)
    labels3 = jax.random.randint(k6, (batch3,), 0, classes3, dtype=jnp.int32)
    loss3 = cross_entropy_label_smooth(
        logits3, labels3, num_classes=classes3, epsilon=epsilon)
    jax.block_until_ready(loss3)
    ref3 = reference(logits3, labels3, classes3, epsilon)
    assert jnp.allclose(loss3, ref3, atol=3e-5, rtol=3e-5), (loss3, ref3)

    print("KERNEL_OK")
</pallas_src>

<mosaic_0001>
module attributes {stable_mosaic.version = 11 : i64} {
  func.func @_ce_label_smooth_kernel(%arg0: i32, %arg1: memref<8x16xf32, #tpu.memory_space<vmem>>, %arg2: memref<8x1xi32, #tpu.memory_space<vmem>>, %arg3: memref<1x8x128xf32, #tpu.memory_space<vmem>>) attributes {dimension_semantics = [#tpu.dimension_semantics<parallel>], iteration_bounds = array<i64: 1>, scalar_prefetch = 0 : i64, scratch_operands = 0 : i64, tpu.core_type = #tpu.core_type<tc>, window_params = [{transform_indices = @transform_0, window_bounds = array<i64: 8, 16>}, {transform_indices = @transform_1, window_bounds = array<i64: 8, 1>}, {transform_indices = @transform_2, window_bounds = array<i64: 1, 8, 128>}]} {
    %c0 = arith.constant 0 : index
    %c0_0 = arith.constant 0 : index
    %0 = vector.load %arg1[%c0, %c0_0] : memref<8x16xf32, #tpu.memory_space<vmem>>, vector<8x16xf32>
    %cst = arith.constant dense<0xFF800000> : vector<8xf32>
    %1 = vector.multi_reduction <maximumf>, %0, %cst [1] : vector<8x16xf32> to vector<8xf32>
    %2 = vector.shape_cast %1 : vector<8xf32> to vector<8x1xf32>
    %3 = vector.broadcast %2 : vector<8x1xf32> to vector<8x16xf32>
    %4 = arith.subf %0, %3 : vector<8x16xf32>
    %5 = math.exp %4 : vector<8x16xf32>
    %cst_1 = arith.constant dense<0.000000e+00> : vector<8xf32>
    %6 = vector.multi_reduction <add>, %5, %cst_1 [1] : vector<8x16xf32> to vector<8xf32>
    %7 = vector.shape_cast %6 : vector<8xf32> to vector<8x1xf32>
    %8 = math.log %7 : vector<8x1xf32>
    %9 = tpu.iota {dimensions = array<i32: 1>} : vector<8x16xi32>
    %c0_2 = arith.constant 0 : index
    %c0_3 = arith.constant 0 : index
    %10 = vector.load %arg2[%c0_2, %c0_3] : memref<8x1xi32, #tpu.memory_space<vmem>>, vector<8x1xi32>
    %11 = vector.broadcast %10 : vector<8x1xi32> to vector<8x16xi32>
    %12 = arith.cmpi eq, %9, %11 : vector<8x16xi32>
    %cst_4 = arith.constant 9.062500e-01 : f32
    %cst_5 = arith.constant 6.250000e-03 : f32
    %13 = vector.broadcast %cst_4 : f32 to vector<8x16xf32>
    %14 = vector.broadcast %cst_5 : f32 to vector<8x16xf32>
    %15 = arith.select %12, %13, %14 : vector<8x16xi1>, vector<8x16xf32>
    %16 = arith.mulf %15, %4 : vector<8x16xf32>
    %cst_6 = arith.constant dense<0.000000e+00> : vector<8xf32>
    %17 = vector.multi_reduction <add>, %16, %cst_6 [1] : vector<8x16xf32> to vector<8xf32>
    %18 = vector.shape_cast %17 : vector<8xf32> to vector<8x1xf32>
    %19 = arith.subf %8, %18 : vector<8x1xf32>
    %c8_i32 = arith.constant 8 : i32
    %20 = arith.muli %arg0, %c8_i32 : i32
    %21 = tpu.iota {dimensions = array<i32: 0>} : vector<8x1xi32>
    %22 = vector.broadcast %20 : i32 to vector<8x1xi32>
    %23 = arith.addi %22, %21 : vector<8x1xi32>
    %c8_i32_7 = arith.constant 8 : i32
    %24 = vector.broadcast %c8_i32_7 : i32 to vector<8x1xi32>
    %25 = arith.cmpi slt, %23, %24 : vector<8x1xi32>
    %cst_8 = arith.constant 0.000000e+00 : f32
    %26 = vector.broadcast %cst_8 : f32 to vector<8x1xf32>
    %27 = arith.select %25, %19, %26 : vector<8x1xi1>, vector<8x1xf32>
    %28 = vector.shape_cast %27 : vector<8x1xf32> to vector<1x8x1xf32>
    %cst_9 = arith.constant dense<0.000000e+00> : vector<1xf32>
    %29 = vector.multi_reduction <add>, %28, %cst_9 [1, 2] : vector<1x8x1xf32> to vector<1xf32>
    %30 = vector.shape_cast %29 : vector<1xf32> to vector<1x1x1xf32>
    %31 = vector.extract %30[0, 0, 0] : f32 from vector<1x1x1xf32>
    %32 = vector.broadcast %31 : f32 to vector<1x8x128xf32>
    %c0_10 = arith.constant 0 : index
    %c0_11 = arith.constant 0 : index
    %c0_12 = arith.constant 0 : index
    %33 = vector.load %arg3[%c0_10, %c0_11, %c0_12] : memref<1x8x128xf32, #tpu.memory_space<vmem>>, vector<1x8x128xf32>
    tpu.vector_store %arg3[%c0_10, %c0_11, %c0_12], %32 {strides = array<i32>} : memref<1x8x128xf32, #tpu.memory_space<vmem>>, vector<1x8x128xf32>,
    return
  }
  func.func @transform_0(%arg0: i32) -> (i32, i32) {
    %c0_i32 = arith.constant 0 : i32
    %c0_i32_0 = arith.constant 0 : i32
    return %arg0, %c0_i32 : i32, i32
  }
  func.func @transform_1(%arg0: i32) -> (i32, i32) {
    %c0_i32 = arith.constant 0 : i32
    %c0_i32_0 = arith.constant 0 : i32
    return %arg0, %c0_i32 : i32, i32
  }
  func.func @transform_2(%arg0: i32) -> (i32, i32, i32) {
    %c0_i32 = arith.constant 0 : i32
    %c0_i32_0 = arith.constant 0 : i32
    %c0_i32_1 = arith.constant 0 : i32
    return %arg0, %c0_i32, %c0_i32_0 : i32, i32, i32
  }
}

</mosaic_0001>

<llo_original>
// kernel: tpu_custom_call.1
$region0: #{tpu_custom_call.1}
  #allocation0 [shape = 'u32[]', space=smem, size = 0x4, offset = 0x4, fixed_abs, tag = 'smem constant byte address 0x4 - core index']
  #allocation1 [shape = 'u32[72,128]{1,0:T(1,128)}', space=vmem, size = 0x9000, scoped, tag = 'internal scratch']
  %s0 = inlined_call_operand.vmem [shape: f32[8,16], index: 0, kind: input, shape index: {}]
  %s1 = inlined_call_operand.vmem [shape: s32[8,1], index: 1, kind: input, shape index: {}]
  %s2 = inlined_call_operand.hbm [shape: f32[1,8,128], index: 2, kind: output, shape index: {}]
  %s3 = sld [smem:[#allocation0]]
  $region18: #{tpu_custom_call.1} parent=0
    _
  %s5 = ssub.s32 1, %s3
  %s6 = scalar_select 0, %s5, %s3
  $region1: #{tpu_custom_call.1} parent=0
    #allocation2 [shape = 'u8[4096]{0}', space=vmem, size = 0x1000, scoped, tag = 'output window, operand 0, single buffered']
    #allocation3 [shape = 's32[1]{0}', space=sflag, size = 0x4, scoped, tag = 'scoped memory for tpu_custom_call.1']
    %7 = vsyncpa [#allocation3], 0
    // Predicated region
    $region2: #{tpu_custom_call.1} parent=1 // pred_check
      _
    $region3: #{tpu_custom_call.1} parent=1 // pred_check_branch
      %9 = sbr.rel (0) target = $region5
    $region4: #{tpu_custom_call.1} parent=1 // pred_region
      _
    $region5: #{tpu_custom_call.1} parent=1 // pred_fallthru
      _
    // Predicated region
    $region6: #{tpu_custom_call.1} parent=1 // pred_check
      _
    $region7: #{tpu_custom_call.1} parent=1 // pred_check_branch
      %11 = sbr.rel (0) target = $region9
    $region8: #{tpu_custom_call.1} parent=1 // pred_region
      _
    $region9: #{tpu_custom_call.1} parent=1 // pred_fallthru
      _
    %v12 = vld [vmem:[%s0] sm:$0xff]
    %vm13 = vcmask 130048
    %v14 = vsel %vm13, %v12, -inf
    %15 = vmax.xlane.f32.xlu0 %v14
    %v16 = vpop.xlane.xlu0 %15
    %v17 = vsub.f32 %v12, %v16
    %v18 = vmul.f32 %v17, 1.442695
    %v19 = vpow.pop %v18
    %v20 = vsel %vm13, %v19, 0.0
    %21 = vadd.xlane.f32.xlu0 %v20
    %v22 = vpop.xlane.xlu0 %21
    %v23 = vlog2.pop %v22
    %v24 = vmul.f32 %v23, 0.6931472
    %v25 = vlaneseq
    %v26 = vand.u32 %v25, 127
    %v27 = vld [vmem:[%s1] sm:$0xff]
    %28 = vset.pattern.permute.xlu0 0
    %29 = vperm.xlu0 %28, %v27
    %v30 = vpop.permute.xlu0 %29
    %vm31 = vcmp.eq.s32.totalorder %v26, %v30
    %v32 = vsel %vm31, 0.90625, 0.00625
    %v33 = vmul.f32 %v32, %v17
    %v34 = vsel %vm13, %v33, 0.0
    %35 = vadd.xlane.f32.xlu0 %v34
    %v36 = vpop.xlane.xlu0 %35
    %v37 = vsub.f32 %v24, %v36
    %s38 = smul.u32 0, 8
    %v39 = vlaneseq
    %v40 = vshrl.u32 %v39, 7
    %v41 = vstv %s38
    %v42 = vadd.s32 %v41, %v40
    %vm43 = vcmp.lt.s32.totalorder %v42, 8
    %v44 = vsel %vm43, %v37, 0.0
    %vm45 = vcmask 7168
    %v46 = vsel %vm45, %v44, 0.0
    %47 = vadd.xlane.f32.xlu0 %v46
    %v48 = vpop.xlane.xlu0 %47
    %v49 = vrot.slane %v48, 4
    %v50 = vadd.f32 %v48, %v49
    %v51 = vrot.slane %v50, 2
    %v52 = vadd.f32 %v50, %v51
    %v53 = vrot.slane %v52, 1
    %v54 = vadd.f32 %v52, %v53
    %s55 = vtos %v54
    %v56 = vstv %s55
    %57 = vst [vmem:[#allocation2] sm:$0xff] %v56
    // Predicated region
    $region10: #{tpu_custom_call.1} parent=1 // pred_check
      _
    $region11: #{tpu_custom_call.1} parent=1 // pred_check_branch
      %59 = sbr.rel (0) target = $region13
    $region12: #{tpu_custom_call.1} parent=1 // pred_region
      %61 = vsyncadd [#allocation3], 0
      %s63 = sshll.u32 [#allocation2], 4
      %s64 = int_to_ptr.vmem [resolvable:$true] %s63
      %s65 = sshll.u32 %s2, 4
      %s66 = int_to_ptr.hbm [resolvable:$true] %s65
      %68 = dma.vmem_to_hbm [thread:$0]  %s64, 128, %s66, [#allocation3]
    $region13: #{tpu_custom_call.1} parent=1 // pred_fallthru
      _
    // Predicated region
    $region14: #{tpu_custom_call.1} parent=1 // pred_check
      _
    $region15: #{tpu_custom_call.1} parent=1 // pred_check_branch
      %70 = sbr.rel (0) target = $region17
    $region16: #{tpu_custom_call.1} parent=1 // pred_region
      %72 = dma.done [#allocation3], 128
    $region17: #{tpu_custom_call.1} parent=1 // pred_fallthru
      _
    %73 = vsyncpa [#allocation3], 1

</llo_original>
